<compile_context>
chip_gen: v5e
topology: v5e:2x2
jax: 0.10.0
libtpu: 0.0.40
codegen_flags: <defaults>
</compile_context>

<pallas_src>
import functools

import jax
import jax.numpy as jnp
from jax.experimental import pallas as pl
from jax.experimental.pallas import tpu as pltpu

LN_EPS = 1e-5  # nn.LayerNorm default


def _round_up(x, m):
    return ((x + m - 1) // m) * m


def _transition_kernel(s_ref, w1_ref, b1_ref, w2_ref, b2_ref, w3_ref, b3_ref,
                       gamma_ref, beta_ref, o_ref, *, inv_c, matmul_dtype):
    # s_ref: (TM, Cp) tile of rows; weights: (Cp, Cp); vectors: (1, Cp) f32.
    s_in = s_ref[...]

    # 3-layer MLP: operands in matmul dtype (bf16 fast path), f32 accumulation
    # on the MXU, ReLU on the VPU, biases added in f32.
    h = jnp.dot(s_in.astype(matmul_dtype), w1_ref[...],
                preferred_element_type=jnp.float32) + b1_ref[...]
    h = jnp.maximum(h, 0.0)
    h = jnp.dot(h.astype(matmul_dtype), w2_ref[...],
                preferred_element_type=jnp.float32) + b2_ref[...]
    h = jnp.maximum(h, 0.0)
    h = jnp.dot(h.astype(matmul_dtype), w3_ref[...],
                preferred_element_type=jnp.float32) + b3_ref[...]

    # Residual add in f32.
    x = s_in.astype(jnp.float32) + h

    # Dropout(p=0.1) is identity in eval/inference mode.
    # TODO(synk): training-mode dropout (stateful PRNG mask) not implemented.

    # LayerNorm over the true c_s lanes.  Padded lanes of x are exactly zero
    # (zero-padded activations, weights and biases), so plain sums over the
    # padded width with the true 1/c_s are exact; no lane mask needed.
    mean = jnp.sum(x, axis=-1, keepdims=True) * inv_c
    var = jnp.sum(x * x, axis=-1, keepdims=True) * inv_c - mean * mean
    var = jnp.maximum(var, 0.0)  # guard cancellation when true var ~ 0
    y = (x - mean) * jax.lax.rsqrt(var + LN_EPS)
    y = y * gamma_ref[...] + beta_ref[...]   # padded gamma/beta are 0 -> 0 lanes

    o_ref[...] = y.astype(o_ref.dtype)


@functools.partial(jax.jit, static_argnames=("block_rows", "use_bf16_matmul"))
def structure_module_transition(s, params, block_rows=1024, use_bf16_matmul=True):
    """s: [..., N, c_s] -> same shape/dtype (inference forward)."""
    orig_shape = s.shape
    c_s = orig_shape[-1]
    s2d = s.reshape(-1, c_s)
    m = s2d.shape[0]
    op_dt = s.dtype

    # bf16 MXU operands (f32 accumulation) unless the caller wants exact f32.
    if use_bf16_matmul or jnp.dtype(op_dt) == jnp.dtype(jnp.bfloat16):
        matmul_dt = jnp.bfloat16
    else:
        matmul_dt = op_dt

    # Lane-dense last dim: pad channels to a multiple of 128.  Zero-padded
    # weights/biases keep the padded lanes exactly zero through the MLP.
    c_pad = _round_up(c_s, 128)

    w1, b1, w2, b2, w3, b3, gamma, beta = params

    def pad_mat(wt):  # (c_s, c_s) -> (c_pad, c_pad), matmul-operand dtype
        return jnp.pad(wt, ((0, c_pad - c_s), (0, c_pad - c_s))).astype(matmul_dt)

    def pad_vec(v):   # (c_s,) -> (1, c_pad), f32
        return jnp.pad(v.astype(jnp.float32), (0, c_pad - c_s)).reshape(1, c_pad)

    # PyTorch Linear: y = x @ W.T + b  (W is [out, in]); pass W.T to the kernel.
    w1t, w2t, w3t = pad_mat(w1.T), pad_mat(w2.T), pad_mat(w3.T)
    b1r, b2r, b3r = pad_vec(b1), pad_vec(b2), pad_vec(b3)
    gr, br = pad_vec(gamma), pad_vec(beta)

    if c_pad != c_s:
        # Ragged c_s pays one extra HBM round trip for pad/slice; the real
        # AlphaFold c_s=384 hits the no-pad fast path (c_s % 128 == 0).
        s2d = jnp.pad(s2d, ((0, 0), (0, c_pad - c_s)))

    # Row tiling: big tiles amortize per-grid-step overhead and feed the MXU a
    # full LHS; cap at ceil(M/2) so the grid has >=2 steps (both v7x TCs work).
    bf16_involved = (jnp.dtype(matmul_dt) == jnp.dtype(jnp.bfloat16)
                     or jnp.dtype(op_dt) == jnp.dtype(jnp.bfloat16))
    row_align = 16 if bf16_involved else 8
    half = _round_up(pl.cdiv(m, 2), row_align)
    m_rounded = _round_up(m, row_align)
    tm = max(row_align,
             min(_round_up(block_rows, row_align), half, m_rounded))
    grid = (pl.cdiv(m, tm),)

    # Explicit VMEM budget (double-buffered row tiles + resident weights +
    # f32 intermediates), clamped well under the 64 MiB v7x physical ceiling.
    in_bytes = tm * c_pad * jnp.dtype(op_dt).itemsize
    w_bytes = 3 * c_pad * c_pad * jnp.dtype(matmul_dt).itemsize
    est = 4 * in_bytes + 2 * w_bytes + 6 * tm * c_pad * 4 + (2 << 20)
    vmem_limit = int(min(max(est, 32 << 20), 56 << 20))

    row_spec = pl.BlockSpec((tm, c_pad), lambda i: (i, 0))
    mat_spec = pl.BlockSpec((c_pad, c_pad), lambda i: (0, 0))   # weights resident
    vec_spec = pl.BlockSpec((1, c_pad), lambda i: (0, 0))

    out = pl.pallas_call(
        functools.partial(_transition_kernel, inv_c=1.0 / c_s,
                          matmul_dtype=matmul_dt),
        out_shape=jax.ShapeDtypeStruct((m, c_pad), op_dt),
        grid_spec=pltpu.PrefetchScalarGridSpec(
            num_scalar_prefetch=0,
            grid=grid,
            in_specs=[row_spec, mat_spec, vec_spec, mat_spec, vec_spec,
                      mat_spec, vec_spec, vec_spec, vec_spec],
            out_specs=row_spec,
        ),
        compiler_params=pltpu.CompilerParams(
            dimension_semantics=("parallel",),
            vmem_limit_bytes=vmem_limit),
        input_output_aliases={0: 0},
    )(s2d, w1t, b1r, w2t, b2r, w3t, b3r, gr, br)

    if c_pad != c_s:
        out = out[:, :c_s]
    return out.reshape(orig_shape)


def init_params(key, c_s, dtype=jnp.float32):
    ks = jax.random.split(key, 6)
    bound = 1.0 / jnp.sqrt(c_s)
    w1 = jax.random.uniform(ks[0], (c_s, c_s), dtype, -bound, bound)
    b1 = jax.random.uniform(ks[1], (c_s,), dtype, -bound, bound)
    w2 = jax.random.uniform(ks[2], (c_s, c_s), dtype, -bound, bound)
    b2 = jax.random.uniform(ks[3], (c_s,), dtype, -bound, bound)
    w3 = jax.random.uniform(ks[4], (c_s, c_s), dtype, -bound, bound)
    b3 = jax.random.uniform(ks[5], (c_s,), dtype, -bound, bound)
    gamma = jnp.ones((c_s,), dtype)
    beta = jnp.zeros((c_s,), dtype)
    return (w1, b1, w2, b2, w3, b3, gamma, beta)


def reference_forward(s, params):
    """Pure-JAX reference of the PyTorch forward (eval mode)."""
    w1, b1, w2, b2, w3, b3, gamma, beta = params
    h = jnp.maximum(s @ w1.T + b1, 0.0)
    h = jnp.maximum(h @ w2.T + b2, 0.0)
    h = h @ w3.T + b3
    x = s + h
    mean = jnp.mean(x, axis=-1, keepdims=True)
    var = jnp.mean((x - mean) ** 2, axis=-1, keepdims=True)
    return (x - mean) / jnp.sqrt(var + LN_EPS) * gamma + beta


if __name__ == "__main__":
    key = jax.random.PRNGKey(0)
    k_in, k_par = jax.random.split(key)

    batch, seq, c_s = 2, 8, 32
    s = jax.random.normal(k_in, (batch, seq, c_s), jnp.float32)
    params = init_params(k_par, c_s)

    ref = reference_forward(s, params)

    # Exact f32 path (matches the PyTorch reference tightly).
    out_f32 = jax.block_until_ready(
        structure_module_transition(s, params, use_bf16_matmul=False))
    assert out_f32.shape == s.shape and out_f32.dtype == s.dtype
    assert jnp.allclose(out_f32, ref, atol=2e-5, rtol=2e-5), (
        float(jnp.max(jnp.abs(out_f32 - ref))))

    # Fast bf16-MXU path (default): same semantics, bf16 matmul operands with
    # f32 accumulation, so compare with a bf16-roundoff tolerance.
    out_bf16 = jax.block_until_ready(structure_module_transition(s, params))
    assert out_bf16.shape == s.shape and out_bf16.dtype == s.dtype
    assert jnp.allclose(out_bf16, ref, atol=5e-2, rtol=5e-2), (
        float(jnp.max(jnp.abs(out_bf16 - ref))))

    print("KERNEL_OK")
</pallas_src>

<mosaic_0001>
module attributes {stable_mosaic.version = 11 : i64} {
  func.func @_transition_kernel(%arg0: i32, %arg1: memref<8x128xf32, #tpu.memory_space<vmem>>, %arg2: memref<128x128xf32, #tpu.memory_space<vmem>>, %arg3: memref<1x128xf32, #tpu.memory_space<vmem>>, %arg4: memref<128x128xf32, #tpu.memory_space<vmem>>, %arg5: memref<1x128xf32, #tpu.memory_space<vmem>>, %arg6: memref<128x128xf32, #tpu.memory_space<vmem>>, %arg7: memref<1x128xf32, #tpu.memory_space<vmem>>, %arg8: memref<1x128xf32, #tpu.memory_space<vmem>>, %arg9: memref<1x128xf32, #tpu.memory_space<vmem>>, %arg10: memref<8x128xf32, #tpu.memory_space<vmem>>) attributes {dimension_semantics = [#tpu.dimension_semantics<parallel>], iteration_bounds = array<i64: 2>, scalar_prefetch = 0 : i64, scratch_operands = 0 : i64, tpu.core_type = #tpu.core_type<tc>, window_params = [{transform_indices = @transform_0, window_bounds = array<i64: 8, 128>}, {pipeline_mode = #tpu.pipeline_mode<synchronous>, transform_indices = @transform_1, window_bounds = array<i64: 128, 128>}, {pipeline_mode = #tpu.pipeline_mode<synchronous>, transform_indices = @transform_2, window_bounds = array<i64: 1, 128>}, {pipeline_mode = #tpu.pipeline_mode<synchronous>, transform_indices = @transform_3, window_bounds = array<i64: 128, 128>}, {pipeline_mode = #tpu.pipeline_mode<synchronous>, transform_indices = @transform_4, window_bounds = array<i64: 1, 128>}, {pipeline_mode = #tpu.pipeline_mode<synchronous>, transform_indices = @transform_5, window_bounds = array<i64: 128, 128>}, {pipeline_mode = #tpu.pipeline_mode<synchronous>, transform_indices = @transform_6, window_bounds = array<i64: 1, 128>}, {pipeline_mode = #tpu.pipeline_mode<synchronous>, transform_indices = @transform_7, window_bounds = array<i64: 1, 128>}, {pipeline_mode = #tpu.pipeline_mode<synchronous>, transform_indices = @transform_8, window_bounds = array<i64: 1, 128>}, {transform_indices = @transform_9, window_bounds = array<i64: 8, 128>}]} {
    %c0 = arith.constant 0 : index
    %c0_0 = arith.constant 0 : index
    %0 = vector.load %arg1[%c0, %c0_0] : memref<8x128xf32, #tpu.memory_space<vmem>>, vector<8x128xf32>
    %c0_1 = arith.constant 0 : index
    %c0_2 = arith.constant 0 : index
    %1 = vector.load %arg2[%c0_1, %c0_2] : memref<128x128xf32, #tpu.memory_space<vmem>>, vector<128x128xf32>
    %cst = arith.constant dense<0.000000e+00> : vector<8x128xf32>
    %2 = tpu.matmul %0, %1, %cst {dimension_numbers = #tpu.dot_dimension_numbers<[1], [0], [0], [1], [0, 0, 1, 1], [], []>} : vector<8x128xf32>, vector<128x128xf32>, vector<8x128xf32> -> vector<8x128xf32>
    %c0_3 = arith.constant 0 : index
    %c0_4 = arith.constant 0 : index
    %3 = vector.load %arg3[%c0_3, %c0_4] : memref<1x128xf32, #tpu.memory_space<vmem>>, vector<1x128xf32>
    %4 = vector.broadcast %3 : vector<1x128xf32> to vector<8x128xf32>
    %5 = arith.addf %2, %4 : vector<8x128xf32>
    %cst_5 = arith.constant 0.000000e+00 : f32
    %6 = vector.broadcast %cst_5 : f32 to vector<8x128xf32>
    %7 = arith.maximumf %5, %6 : vector<8x128xf32>
    %c0_6 = arith.constant 0 : index
    %c0_7 = arith.constant 0 : index
    %8 = vector.load %arg4[%c0_6, %c0_7] : memref<128x128xf32, #tpu.memory_space<vmem>>, vector<128x128xf32>
    %cst_8 = arith.constant dense<0.000000e+00> : vector<8x128xf32>
    %9 = tpu.matmul %7, %8, %cst_8 {dimension_numbers = #tpu.dot_dimension_numbers<[1], [0], [0], [1], [0, 0, 1, 1], [], []>} : vector<8x128xf32>, vector<128x128xf32>, vector<8x128xf32> -> vector<8x128xf32>
    %c0_9 = arith.constant 0 : index
    %c0_10 = arith.constant 0 : index
    %10 = vector.load %arg5[%c0_9, %c0_10] : memref<1x128xf32, #tpu.memory_space<vmem>>, vector<1x128xf32>
    %11 = vector.broadcast %10 : vector<1x128xf32> to vector<8x128xf32>
    %12 = arith.addf %9, %11 : vector<8x128xf32>
    %cst_11 = arith.constant 0.000000e+00 : f32
    %13 = vector.broadcast %cst_11 : f32 to vector<8x128xf32>
    %14 = arith.maximumf %12, %13 : vector<8x128xf32>
    %c0_12 = arith.constant 0 : index
    %c0_13 = arith.constant 0 : index
    %15 = vector.load %arg6[%c0_12, %c0_13] : memref<128x128xf32, #tpu.memory_space<vmem>>, vector<128x128xf32>
    %cst_14 = arith.constant dense<0.000000e+00> : vector<8x128xf32>
    %16 = tpu.matmul %14, %15, %cst_14 {dimension_numbers = #tpu.dot_dimension_numbers<[1], [0], [0], [1], [0, 0, 1, 1], [], []>} : vector<8x128xf32>, vector<128x128xf32>, vector<8x128xf32> -> vector<8x128xf32>
    %c0_15 = arith.constant 0 : index
    %c0_16 = arith.constant 0 : index
    %17 = vector.load %arg7[%c0_15, %c0_16] : memref<1x128xf32, #tpu.memory_space<vmem>>, vector<1x128xf32>
    %18 = vector.broadcast %17 : vector<1x128xf32> to vector<8x128xf32>
    %19 = arith.addf %16, %18 : vector<8x128xf32>
    %20 = arith.addf %0, %19 : vector<8x128xf32>
    %cst_17 = arith.constant dense<0.000000e+00> : vector<8xf32>
    %21 = vector.multi_reduction <add>, %20, %cst_17 [1] : vector<8x128xf32> to vector<8xf32>
    %22 = vector.shape_cast %21 : vector<8xf32> to vector<8x1xf32>
    %cst_18 = arith.constant 3.125000e-02 : f32
    %23 = vector.broadcast %cst_18 : f32 to vector<8x1xf32>
    %24 = arith.mulf %22, %23 : vector<8x1xf32>
    %25 = arith.mulf %20, %20 : vector<8x128xf32>
    %cst_19 = arith.constant dense<0.000000e+00> : vector<8xf32>
    %26 = vector.multi_reduction <add>, %25, %cst_19 [1] : vector<8x128xf32> to vector<8xf32>
    %27 = vector.shape_cast %26 : vector<8xf32> to vector<8x1xf32>
    %cst_20 = arith.constant 3.125000e-02 : f32
    %28 = vector.broadcast %cst_20 : f32 to vector<8x1xf32>
    %29 = arith.mulf %27, %28 : vector<8x1xf32>
    %30 = arith.mulf %24, %24 : vector<8x1xf32>
    %31 = arith.subf %29, %30 : vector<8x1xf32>
    %cst_21 = arith.constant 0.000000e+00 : f32
    %32 = vector.broadcast %cst_21 : f32 to vector<8x1xf32>
    %33 = arith.maximumf %31, %32 : vector<8x1xf32>
    %34 = vector.broadcast %24 : vector<8x1xf32> to vector<8x128xf32>
    %35 = arith.subf %20, %34 : vector<8x128xf32>
    %cst_22 = arith.constant 9.99999974E-6 : f32
    %36 = vector.broadcast %cst_22 : f32 to vector<8x1xf32>
    %37 = arith.addf %33, %36 : vector<8x1xf32>
    %38 = math.rsqrt %37 : vector<8x1xf32>
    %39 = vector.broadcast %38 : vector<8x1xf32> to vector<8x128xf32>
    %40 = arith.mulf %35, %39 : vector<8x128xf32>
    %c0_23 = arith.constant 0 : index
    %c0_24 = arith.constant 0 : index
    %41 = vector.load %arg8[%c0_23, %c0_24] : memref<1x128xf32, #tpu.memory_space<vmem>>, vector<1x128xf32>
    %42 = vector.broadcast %41 : vector<1x128xf32> to vector<8x128xf32>
    %43 = arith.mulf %40, %42 : vector<8x128xf32>
    %c0_25 = arith.constant 0 : index
    %c0_26 = arith.constant 0 : index
    %44 = vector.load %arg9[%c0_25, %c0_26] : memref<1x128xf32, #tpu.memory_space<vmem>>, vector<1x128xf32>
    %45 = vector.broadcast %44 : vector<1x128xf32> to vector<8x128xf32>
    %46 = arith.addf %43, %45 : vector<8x128xf32>
    %c0_27 = arith.constant 0 : index
    %c0_28 = arith.constant 0 : index
    %47 = vector.load %arg10[%c0_27, %c0_28] : memref<8x128xf32, #tpu.memory_space<vmem>>, vector<8x128xf32>
    tpu.vector_store %arg10[%c0_27, %c0_28], %46 {strides = array<i32>} : memref<8x128xf32, #tpu.memory_space<vmem>>, vector<8x128xf32>,
    return
  }
  func.func @transform_0(%arg0: i32) -> (i32, i32) {
    %c0_i32 = arith.constant 0 : i32
    %c0_i32_0 = arith.constant 0 : i32
    return %arg0, %c0_i32 : i32, i32
  }
  func.func @transform_1(%arg0: i32) -> (i32, i32) {
    %c0_i32 = arith.constant 0 : i32
    %c0_i32_0 = arith.constant 0 : i32
    %c0_i32_1 = arith.constant 0 : i32
    return %c0_i32, %c0_i32_0 : i32, i32
  }
  func.func @transform_2(%arg0: i32) -> (i32, i32) {
    %c0_i32 = arith.constant 0 : i32
    %c0_i32_0 = arith.constant 0 : i32
    %c0_i32_1 = arith.constant 0 : i32
    return %c0_i32, %c0_i32_0 : i32, i32
  }
  func.func @transform_3(%arg0: i32) -> (i32, i32) {
    %c0_i32 = arith.constant 0 : i32
    %c0_i32_0 = arith.constant 0 : i32
    %c0_i32_1 = arith.constant 0 : i32
    return %c0_i32, %c0_i32_0 : i32, i32
  }
  func.func @transform_4(%arg0: i32) -> (i32, i32) {
    %c0_i32 = arith.constant 0 : i32
    %c0_i32_0 = arith.constant 0 : i32
    %c0_i32_1 = arith.constant 0 : i32
    return %c0_i32, %c0_i32_0 : i32, i32
  }
  func.func @transform_5(%arg0: i32) -> (i32, i32) {
    %c0_i32 = arith.constant 0 : i32
    %c0_i32_0 = arith.constant 0 : i32
    %c0_i32_1 = arith.constant 0 : i32
    return %c0_i32, %c0_i32_0 : i32, i32
  }
  func.func @transform_6(%arg0: i32) -> (i32, i32) {
    %c0_i32 = arith.constant 0 : i32
    %c0_i32_0 = arith.constant 0 : i32
    %c0_i32_1 = arith.constant 0 : i32
    return %c0_i32, %c0_i32_0 : i32, i32
  }
  func.func @transform_7(%arg0: i32) -> (i32, i32) {
    %c0_i32 = arith.constant 0 : i32
    %c0_i32_0 = arith.constant 0 : i32
    %c0_i32_1 = arith.constant 0 : i32
    return %c0_i32, %c0_i32_0 : i32, i32
  }
  func.func @transform_8(%arg0: i32) -> (i32, i32) {
    %c0_i32 = arith.constant 0 : i32
    %c0_i32_0 = arith.constant 0 : i32
    %c0_i32_1 = arith.constant 0 : i32
    return %c0_i32, %c0_i32_0 : i32, i32
  }
  func.func @transform_9(%arg0: i32) -> (i32, i32) {
    %c0_i32 = arith.constant 0 : i32
    %c0_i32_0 = arith.constant 0 : i32
    return %arg0, %c0_i32 : i32, i32
  }
}

</mosaic_0001>

<llo_original>
// kernel: structure_module_transition.1
$region0: #{structure_module_transition.1}
  #allocation0 [shape = 'u32[]', space=smem, size = 0x4, offset = 0x4, fixed_abs, tag = 'smem constant byte address 0x4 - core index']
  #allocation1 [shape = 'u32[72,128]{1,0:T(1,128)}', space=vmem, size = 0x9000, scoped, tag = 'internal scratch']
  %s0 = inlined_call_operand.vmem [shape: f32[16,128], index: 0, kind: input, shape index: {}, may-alias: {0,9}]
  %s1 = inlined_call_operand.vmem [shape: f32[128,128], index: 1, kind: input, shape index: {}]
  %s2 = inlined_call_operand.vmem [shape: f32[1,128], index: 2, kind: input, shape index: {}]
  %s3 = inlined_call_operand.vmem [shape: f32[128,128], index: 3, kind: input, shape index: {}]
  %s4 = inlined_call_operand.vmem [shape: f32[1,128], index: 4, kind: input, shape index: {}]
  %s5 = inlined_call_operand.vmem [shape: f32[128,128], index: 5, kind: input, shape index: {}]
  %s6 = inlined_call_operand.vmem [shape: f32[1,128], index: 6, kind: input, shape index: {}]
  %s7 = inlined_call_operand.vmem [shape: f32[1,128], index: 7, kind: input, shape index: {}]
  %s8 = inlined_call_operand.vmem [shape: f32[1,128], index: 8, kind: input, shape index: {}]
  %s9 = inlined_call_operand.vmem [shape: f32[16,128], index: 9, kind: output, shape index: {}, may-alias: {0,9}]
  %s10 = sld [smem:[#allocation0]]
  $region69: #{structure_module_transition.1} parent=0
    _
  %s12 = ssub.s32 1, %s10
  %s13 = scalar_select 0, %s12, %s10
  loop: start=0, step=1, limit=4
  $region2: #{structure_module_transition.1} parent=0 // loop_pre_header
    _
  $region3: #{structure_module_transition.1} parent=0 // loop_header
    %s15 = sphi 0, %s19
    %p16 = scmp.ge.s32.totalorder %s15, 4
    %s25 = sphi 0, %s27
    %s28 = sphi 0, %s25
    %s29 = sphi 0, %s28
    %s45 = sphi 0, %s29
    %s49 = sphi 0, %s49
    %s51 = sphi 0, %s49
    %s52 = sphi 0, %s51
    %s66 = sphi 0, %s52
    %s70 = sphi 0, %s70
    %s72 = sphi 0, %s70
    %s73 = sphi 0, %s72
    %s87 = sphi 0, %s73
    %s91 = sphi 0, %s91
    %s93 = sphi 0, %s91
    %s94 = sphi 0, %s93
    %s108 = sphi 0, %s94
    %s112 = sphi 0, %s112
    %s114 = sphi 0, %s112
    %s115 = sphi 0, %s114
    %s129 = sphi 0, %s115
    %s133 = sphi 0, %s133
    %s135 = sphi 0, %s133
    %s136 = sphi 0, %s135
    %s150 = sphi 0, %s136
    %s154 = sphi 0, %s154
    %s156 = sphi 0, %s154
    %s157 = sphi 0, %s156
    %s171 = sphi 0, %s157
    %s175 = sphi 0, %s175
    %s177 = sphi 0, %s175
    %s178 = sphi 0, %s177
    %s192 = sphi 0, %s178
    %s196 = sphi 0, %s196
    %s198 = sphi 0, %s196
    %s199 = sphi 0, %s198
    %s213 = sphi 0, %s199
    %s219 = sphi 0, %s221
    %s222 = sphi 0, %s219
    %s223 = sphi 0, %s222
    %s239 = sphi 0, %s223
  $region4: #{structure_module_transition.1} parent=0 // loop_header_branch
    %18 = sbr.rel (%p16) target = $region8
  $region5: #{structure_module_transition.1} parent=0 // loop_body
    %s20 = ssub.s32 %s15, 1
    %s21 = ssub.s32 %s15, 2
    %s22 = sadd.s32 %s15, 1
    %s23 = ssub.s32 %s15, %s22
    %p24 = scmp.eq.s32.totalorder %s23, 0
    %s26 = sadd.s32 %s25, 1
    %s27 = scalar_select %p24, %s25, %s26
    %p30 = pneg %p24
    %p31 = scmp.eq.s32.totalorder %s15, 1
    %p32 = por %p30, %p31
    %p33 = scmp.ne.s32.totalorder %s25, %s28
    %p34 = scmp.eq.s32.totalorder %s15, 0
    %p35 = por %p33, %p34
    %p36 = scmp.ne.s32.totalorder %s25, %s28
    %p37 = scmp.eq.s32.totalorder %s20, 1
    %p38 = por %p36, %p37
    %p39 = scmp.ne.s32.totalorder %s28, %s29
    %p40 = scmp.eq.s32.totalorder %s20, 0
    %p41 = por %p39, %p40
    %p42 = scmp.ne.s32.totalorder %s28, %s29
    %p43 = scmp.eq.s32.totalorder %s21, 1
    %p44 = por %p42, %p43
    %p46 = scmp.ne.s32.totalorder %s29, %s45
    %p47 = scmp.eq.s32.totalorder %s21, 0
    %p48 = por %p46, %p47
    %s50 = sadd.s32 %s49, 1
    %p53 = scmp.eq.s32.totalorder %s15, 1
    %p54 = scmp.ne.s32.totalorder %s49, %s51
    %p55 = scmp.eq.s32.totalorder %s15, 0
    %p56 = por %p54, %p55
    %p57 = scmp.ne.s32.totalorder %s49, %s51
    %p58 = scmp.eq.s32.totalorder %s20, 1
    %p59 = por %p57, %p58
    %p60 = scmp.ne.s32.totalorder %s51, %s52
    %p61 = scmp.eq.s32.totalorder %s20, 0
    %p62 = por %p60, %p61
    %p63 = scmp.ne.s32.totalorder %s51, %s52
    %p64 = scmp.eq.s32.totalorder %s21, 1
    %p65 = por %p63, %p64
    %p67 = scmp.ne.s32.totalorder %s52, %s66
    %p68 = scmp.eq.s32.totalorder %s21, 0
    %p69 = por %p67, %p68
    %s71 = sadd.s32 %s70, 1
    %p74 = scmp.eq.s32.totalorder %s15, 1
    %p75 = scmp.ne.s32.totalorder %s70, %s72
    %p76 = scmp.eq.s32.totalorder %s15, 0
    %p77 = por %p75, %p76
    %p78 = scmp.ne.s32.totalorder %s70, %s72
    %p79 = scmp.eq.s32.totalorder %s20, 1
    %p80 = por %p78, %p79
    %p81 = scmp.ne.s32.totalorder %s72, %s73
    %p82 = scmp.eq.s32.totalorder %s20, 0
    %p83 = por %p81, %p82
    %p84 = scmp.ne.s32.totalorder %s72, %s73
    %p85 = scmp.eq.s32.totalorder %s21, 1
    %p86 = por %p84, %p85
    %p88 = scmp.ne.s32.totalorder %s73, %s87
    %p89 = scmp.eq.s32.totalorder %s21, 0
    %p90 = por %p88, %p89
    %s92 = sadd.s32 %s91, 1
    %p95 = scmp.eq.s32.totalorder %s15, 1
    %p96 = scmp.ne.s32.totalorder %s91, %s93
    %p97 = scmp.eq.s32.totalorder %s15, 0
    %p98 = por %p96, %p97
    %p99 = scmp.ne.s32.totalorder %s91, %s93
    %p100 = scmp.eq.s32.totalorder %s20, 1
    %p101 = por %p99, %p100
    %p102 = scmp.ne.s32.totalorder %s93, %s94
    %p103 = scmp.eq.s32.totalorder %s20, 0
    %p104 = por %p102, %p103
    %p105 = scmp.ne.s32.totalorder %s93, %s94
    %p106 = scmp.eq.s32.totalorder %s21, 1
    %p107 = por %p105, %p106
    %p109 = scmp.ne.s32.totalorder %s94, %s108
    %p110 = scmp.eq.s32.totalorder %s21, 0
    %p111 = por %p109, %p110
    %s113 = sadd.s32 %s112, 1
    %p116 = scmp.eq.s32.totalorder %s15, 1
    %p117 = scmp.ne.s32.totalorder %s112, %s114
    %p118 = scmp.eq.s32.totalorder %s15, 0
    %p119 = por %p117, %p118
    %p120 = scmp.ne.s32.totalorder %s112, %s114
    %p121 = scmp.eq.s32.totalorder %s20, 1
    %p122 = por %p120, %p121
    %p123 = scmp.ne.s32.totalorder %s114, %s115
    %p124 = scmp.eq.s32.totalorder %s20, 0
    %p125 = por %p123, %p124
    %p126 = scmp.ne.s32.totalorder %s114, %s115
    %p127 = scmp.eq.s32.totalorder %s21, 1
    %p128 = por %p126, %p127
    %p130 = scmp.ne.s32.totalorder %s115, %s129
    %p131 = scmp.eq.s32.totalorder %s21, 0
    %p132 = por %p130, %p131
    %s134 = sadd.s32 %s133, 1
    %p137 = scmp.eq.s32.totalorder %s15, 1
    %p138 = scmp.ne.s32.totalorder %s133, %s135
    %p139 = scmp.eq.s32.totalorder %s15, 0
    %p140 = por %p138, %p139
    %p141 = scmp.ne.s32.totalorder %s133, %s135
    %p142 = scmp.eq.s32.totalorder %s20, 1
    %p143 = por %p141, %p142
    %p144 = scmp.ne.s32.totalorder %s135, %s136
    %p145 = scmp.eq.s32.totalorder %s20, 0
    %p146 = por %p144, %p145
    %p147 = scmp.ne.s32.totalorder %s135, %s136
    %p148 = scmp.eq.s32.totalorder %s21, 1
    %p149 = por %p147, %p148
    %p151 = scmp.ne.s32.totalorder %s136, %s150
    %p152 = scmp.eq.s32.totalorder %s21, 0
    %p153 = por %p151, %p152
    %s155 = sadd.s32 %s154, 1
    %p158 = scmp.eq.s32.totalorder %s15, 1
    %p159 = scmp.ne.s32.totalorder %s154, %s156
    %p160 = scmp.eq.s32.totalorder %s15, 0
    %p161 = por %p159, %p160
    %p162 = scmp.ne.s32.totalorder %s154, %s156
    %p163 = scmp.eq.s32.totalorder %s20, 1
    %p164 = por %p162, %p163
    %p165 = scmp.ne.s32.totalorder %s156, %s157
    %p166 = scmp.eq.s32.totalorder %s20, 0
    %p167 = por %p165, %p166
    %p168 = scmp.ne.s32.totalorder %s156, %s157
    %p169 = scmp.eq.s32.totalorder %s21, 1
    %p170 = por %p168, %p169
    %p172 = scmp.ne.s32.totalorder %s157, %s171
    %p173 = scmp.eq.s32.totalorder %s21, 0
    %p174 = por %p172, %p173
    %s176 = sadd.s32 %s175, 1
    %p179 = scmp.eq.s32.totalorder %s15, 1
    %p180 = scmp.ne.s32.totalorder %s175, %s177
    %p181 = scmp.eq.s32.totalorder %s15, 0
    %p182 = por %p180, %p181
    %p183 = scmp.ne.s32.totalorder %s175, %s177
    %p184 = scmp.eq.s32.totalorder %s20, 1
    %p185 = por %p183, %p184
    %p186 = scmp.ne.s32.totalorder %s177, %s178
    %p187 = scmp.eq.s32.totalorder %s20, 0
    %p188 = por %p186, %p187
    %p189 = scmp.ne.s32.totalorder %s177, %s178
    %p190 = scmp.eq.s32.totalorder %s21, 1
    %p191 = por %p189, %p190
    %p193 = scmp.ne.s32.totalorder %s178, %s192
    %p194 = scmp.eq.s32.totalorder %s21, 0
    %p195 = por %p193, %p194
    %s197 = sadd.s32 %s196, 1
    %p200 = scmp.eq.s32.totalorder %s15, 1
    %p201 = scmp.ne.s32.totalorder %s196, %s198
    %p202 = scmp.eq.s32.totalorder %s15, 0
    %p203 = por %p201, %p202
    %p204 = scmp.ne.s32.totalorder %s196, %s198
    %p205 = scmp.eq.s32.totalorder %s20, 1
    %p206 = por %p204, %p205
    %p207 = scmp.ne.s32.totalorder %s198, %s199
    %p208 = scmp.eq.s32.totalorder %s20, 0
    %p209 = por %p207, %p208
    %p210 = scmp.ne.s32.totalorder %s198, %s199
    %p211 = scmp.eq.s32.totalorder %s21, 1
    %p212 = por %p210, %p211
    %p214 = scmp.ne.s32.totalorder %s199, %s213
    %p215 = scmp.eq.s32.totalorder %s21, 0
    %p216 = por %p214, %p215
    %s217 = ssub.s32 %s15, %s22
    %p218 = scmp.eq.s32.totalorder %s217, 0
    %s220 = sadd.s32 %s219, 1
    %s221 = scalar_select %p218, %s219, %s220
    %p224 = pneg %p218
    %p225 = scmp.eq.s32.totalorder %s15, 1
    %p226 = por %p224, %p225
    %p227 = scmp.ne.s32.totalorder %s219, %s222
    %p228 = scmp.eq.s32.totalorder %s15, 0
    %p229 = por %p227, %p228
    %p230 = scmp.ne.s32.totalorder %s219, %s222
    %p231 = scmp.eq.s32.totalorder %s20, 1
    %p232 = por %p230, %p231
    %p233 = scmp.ne.s32.totalorder %s222, %s223
    %p234 = scmp.eq.s32.totalorder %s20, 0
    %p235 = por %p233, %p234
    %p236 = scmp.ne.s32.totalorder %s222, %s223
    %p237 = scmp.eq.s32.totalorder %s21, 1
    %p238 = por %p236, %p237
    %p240 = scmp.ne.s32.totalorder %s223, %s239
    %p241 = scmp.eq.s32.totalorder %s21, 0
    %p242 = por %p240, %p241
    %p243 = scmp.le.s32.totalorder 1, %s15
    %p244 = scmp.lt.s32.totalorder %s15, 3
    %p245 = pnand %p243, %p244
    %p246 = pneg %p245
    // Predicated region
    $region9: #{structure_module_transition.1} parent=5 // pred_check
      _
    $region10: #{structure_module_transition.1} parent=5 // pred_check_branch
      %248 = sbr.rel (%p245) target = $region12
    $region11: #{structure_module_transition.1} parent=5 // pred_region
      %s249 = ssub.s32 %s15, 1
      // Predicated region
      $region13: #{structure_module_transition.1} parent=11 // pred_check
        %p250 = pneg %p62
      $region14: #{structure_module_transition.1} parent=11 // pred_check_branch
        %252 = sbr.rel (%p250) target = $region16
      $region15: #{structure_module_transition.1} parent=11 // pred_region
        _
      $region16: #{structure_module_transition.1} parent=11 // pred_fallthru
        _
      // Predicated region
      $region17: #{structure_module_transition.1} parent=11 // pred_check
        %p253 = pneg %p83
      $region18: #{structure_module_transition.1} parent=11 // pred_check_branch
        %255 = sbr.rel (%p253) target = $region20
      $region19: #{structure_module_transition.1} parent=11 // pred_region
        _
      $region20: #{structure_module_transition.1} parent=11 // pred_fallthru
        _
      // Predicated region
      $region21: #{structure_module_transition.1} parent=11 // pred_check
        %p256 = pneg %p104
      $region22: #{structure_module_transition.1} parent=11 // pred_check_branch
        %258 = sbr.rel (%p256) target = $region24
      $region23: #{structure_module_transition.1} parent=11 // pred_region
        _
      $region24: #{structure_module_transition.1} parent=11 // pred_fallthru
        _
      // Predicated region
      $region25: #{structure_module_transition.1} parent=11 // pred_check
        %p259 = pneg %p125
      $region26: #{structure_module_transition.1} parent=11 // pred_check_branch
        %261 = sbr.rel (%p259) target = $region28
      $region27: #{structure_module_transition.1} parent=11 // pred_region
        _
      $region28: #{structure_module_transition.1} parent=11 // pred_fallthru
        _
      // Predicated region
      $region29: #{structure_module_transition.1} parent=11 // pred_check
        %p262 = pneg %p146
      $region30: #{structure_module_transition.1} parent=11 // pred_check_branch
        %264 = sbr.rel (%p262) target = $region32
      $region31: #{structure_module_transition.1} parent=11 // pred_region
        _
      $region32: #{structure_module_transition.1} parent=11 // pred_fallthru
        _
      // Predicated region
      $region33: #{structure_module_transition.1} parent=11 // pred_check
        %p265 = pneg %p167
      $region34: #{structure_module_transition.1} parent=11 // pred_check_branch
        %267 = sbr.rel (%p265) target = $region36
      $region35: #{structure_module_transition.1} parent=11 // pred_region
        _
      $region36: #{structure_module_transition.1} parent=11 // pred_fallthru
        _
      // Predicated region
      $region37: #{structure_module_transition.1} parent=11 // pred_check
        %p268 = pneg %p188
      $region38: #{structure_module_transition.1} parent=11 // pred_check_branch
        %270 = sbr.rel (%p268) target = $region40
      $region39: #{structure_module_transition.1} parent=11 // pred_region
        _
      $region40: #{structure_module_transition.1} parent=11 // pred_fallthru
        _
      // Predicated region
      $region41: #{structure_module_transition.1} parent=11 // pred_check
        %p271 = pneg %p209
      $region42: #{structure_module_transition.1} parent=11 // pred_check_branch
        %273 = sbr.rel (%p271) target = $region44
      $region43: #{structure_module_transition.1} parent=11 // pred_region
        _
      $region44: #{structure_module_transition.1} parent=11 // pred_fallthru
        _
    $region12: #{structure_module_transition.1} parent=5 // pred_fallthru
      _
    %p274 = scmp.lt.s32.totalorder %s15, 2
    // Predicated region
    $region45: #{structure_module_transition.1} parent=5 // pred_check
      %p275 = pneg %p274
    $region46: #{structure_module_transition.1} parent=5 // pred_check_branch
      %277 = sbr.rel (%p275) target = $region48
    $region47: #{structure_module_transition.1} parent=5 // pred_region
      // Predicated region
      $region49: #{structure_module_transition.1} parent=47 // pred_check
        %p278 = pneg %p35
      $region50: #{structure_module_transition.1} parent=47 // pred_check_branch
        %280 = sbr.rel (%p278) target = $region52
      $region51: #{structure_module_transition.1} parent=47 // pred_region
        %p281 = scmp.lt.s32.totalorder %s15, 1
        %s282 = scalar_select %p281, %s15, 1
        %s283 = smul.addr %s282, 8
        %s284 = scalar_lea.vmem %s0, %s283
      $region52: #{structure_module_transition.1} parent=47 // pred_fallthru
        _
    $region48: #{structure_module_transition.1} parent=5 // pred_fallthru
      _
    %p285 = scmp.le.s32.totalorder 1, %s15
    %p286 = scmp.lt.s32.totalorder %s15, 3
    %p287 = pnand %p285, %p286
    %p288 = pneg %p287
    // Predicated region
    $region53: #{structure_module_transition.1} parent=5 // pred_check
      _
    $region54: #{structure_module_transition.1} parent=5 // pred_check_branch
      %290 = sbr.rel (%p287) target = $region56
    $region55: #{structure_module_transition.1} parent=5 // pred_region
      %s291 = ssub.s32 %s15, 1
      %p292 = scmp.lt.s32.totalorder %s20, 1
      %s293 = scalar_select %p292, %s20, 1
      %s294 = smul.addr %s293, 8
      %s295 = scalar_lea.vmem %s0, %s294
      %p296 = pneg %p41
      %p297 = pneg %p38
      %p298 = pneg %p62
      %p299 = pneg %p59
      %p300 = pneg %p83
      %p301 = pneg %p80
      %p302 = pneg %p104
      %p303 = pneg %p101
      %p304 = pneg %p125
      %p305 = pneg %p122
      %p306 = pneg %p146
      %p307 = pneg %p143
      %p308 = pneg %p167
      %p309 = pneg %p164
      %p310 = pneg %p188
      %p311 = pneg %p185
      %p312 = pneg %p209
      %p313 = pneg %p206
      %p314 = pneg %p235
      %p315 = pneg %p232
      %p316 = scmp.lt.s32.totalorder %s20, 1
      %s317 = scalar_select %p316, %s20, 1
      %s318 = smul.addr %s317, 8
      %s319 = scalar_lea.vmem %s9, %s318
      %p320 = scmp.lt.s32.totalorder %s20, 1
      %s321 = scalar_select %p320, %s20, 1
      %s322 = smul.addr %s321, 8
      %s323 = scalar_lea.vmem %s0, %s322
      %p324 = scmp.lt.s32.totalorder %s20, 1
      %s325 = scalar_select %p324, %s20, 1
      %s326 = smul.addr %s325, 8
      %s327 = scalar_lea.vmem %s9, %s326
      %v328 = vld [vmem:[%s323] sm:$0xff]
      %v329 = vld [vmem:[%s1] sm:$0xff]
      %v330 = vld [vmem:[%s1 + $0x8] sm:$0xff]
      %v331 = vld [vmem:[%s1 + $0x10] sm:$0xff]
      %v332 = vld [vmem:[%s1 + $0x18] sm:$0xff]
      %v333 = vld [vmem:[%s1 + $0x20] sm:$0xff]
      %v334 = vld [vmem:[%s1 + $0x28] sm:$0xff]
      %v335 = vld [vmem:[%s1 + $0x30] sm:$0xff]
      %v336 = vld [vmem:[%s1 + $0x38] sm:$0xff]
      %v337 = vld [vmem:[%s1 + $0x40] sm:$0xff]
      %v338 = vld [vmem:[%s1 + $0x48] sm:$0xff]
      %v339 = vld [vmem:[%s1 + $0x50] sm:$0xff]
      %v340 = vld [vmem:[%s1 + $0x58] sm:$0xff]
      %v341 = vld [vmem:[%s1 + $0x60] sm:$0xff]
      %v342 = vld [vmem:[%s1 + $0x68] sm:$0xff]
      %v343 = vld [vmem:[%s1 + $0x70] sm:$0xff]
      %v344 = vld [vmem:[%s1 + $0x78] sm:$0xff]
      %v345 = vld [vmem:[%s2] sm:$0x1]
      %v347 = vperm.slane %v345, 0
      %349 = vmatpush.msra.mxu0 %v344
      %350 = vmatpush.msra.mxu0 %v343
      %351 = vmatpush.msra.mxu0 %v342
      %352 = vmatpush.msra.mxu0 %v341
      %353 = vmatpush.msra.mxu0 %v340
      %354 = vmatpush.msra.mxu0 %v339
      %355 = vmatpush.msra.mxu0 %v338
      %356 = vmatpush.msra.mxu0 %v337
      %357 = vmatpush.msra.mxu0 %v336
      %358 = vmatpush.msra.mxu0 %v335
      %359 = vmatpush.msra.mxu0 %v334
      %360 = vmatpush.msra.mxu0 %v333
      %361 = vmatpush.msra.mxu0 %v332
      %362 = vmatpush.msra.mxu0 %v331
      %363 = vmatpush.msra.mxu0 %v330
      %364 = vmatpush.msra.mxu0 %v329
      %365 = vmatmul.f32.gmra.mxu0 %v328
      %v366 = vpop.f32.mrf.mxu0
      %v367 = vadd.f32 %v347, %v366
      %368 = vdwg.mxu0
      %v369 = vmax.f32 %v367, 0.0
      %v370 = vld [vmem:[%s3] sm:$0xff]
      %v371 = vld [vmem:[%s3 + $0x8] sm:$0xff]
      %v372 = vld [vmem:[%s3 + $0x10] sm:$0xff]
      %v373 = vld [vmem:[%s3 + $0x18] sm:$0xff]
      %v374 = vld [vmem:[%s3 + $0x20] sm:$0xff]
      %v375 = vld [vmem:[%s3 + $0x28] sm:$0xff]
      %v376 = vld [vmem:[%s3 + $0x30] sm:$0xff]
      %v377 = vld [vmem:[%s3 + $0x38] sm:$0xff]
      %v378 = vld [vmem:[%s3 + $0x40] sm:$0xff]
      %v379 = vld [vmem:[%s3 + $0x48] sm:$0xff]
      %v380 = vld [vmem:[%s3 + $0x50] sm:$0xff]
      %v381 = vld [vmem:[%s3 + $0x58] sm:$0xff]
      %v382 = vld [vmem:[%s3 + $0x60] sm:$0xff]
      %v383 = vld [vmem:[%s3 + $0x68] sm:$0xff]
      %v384 = vld [vmem:[%s3 + $0x70] sm:$0xff]
      %v385 = vld [vmem:[%s3 + $0x78] sm:$0xff]
      %v386 = vld [vmem:[%s4] sm:$0x1]
      %v388 = vperm.slane %v386, 0
      %390 = vmatpush.msra.mxu0 %v385
      %391 = vmatpush.msra.mxu0 %v384
      %392 = vmatpush.msra.mxu0 %v383
      %393 = vmatpush.msra.mxu0 %v382
      %394 = vmatpush.msra.mxu0 %v381
      %395 = vmatpush.msra.mxu0 %v380
      %396 = vmatpush.msra.mxu0 %v379
      %397 = vmatpush.msra.mxu0 %v378
      %398 = vmatpush.msra.mxu0 %v377
      %399 = vmatpush.msra.mxu0 %v376
      %400 = vmatpush.msra.mxu0 %v375
      %401 = vmatpush.msra.mxu0 %v374
      %402 = vmatpush.msra.mxu0 %v373
      %403 = vmatpush.msra.mxu0 %v372
      %404 = vmatpush.msra.mxu0 %v371
      %405 = vmatpush.msra.mxu0 %v370
      %406 = vmatmul.f32.gmra.mxu0 %v369
      %v407 = vpop.f32.mrf.mxu0
      %v408 = vadd.f32 %v388, %v407
      %409 = vdwg.mxu0
      %v410 = vmax.f32 %v408, 0.0
      %v411 = vld [vmem:[%s5] sm:$0xff]
      %v412 = vld [vmem:[%s5 + $0x8] sm:$0xff]
      %v413 = vld [vmem:[%s5 + $0x10] sm:$0xff]
      %v414 = vld [vmem:[%s5 + $0x18] sm:$0xff]
      %v415 = vld [vmem:[%s5 + $0x20] sm:$0xff]
      %v416 = vld [vmem:[%s5 + $0x28] sm:$0xff]
      %v417 = vld [vmem:[%s5 + $0x30] sm:$0xff]
      %v418 = vld [vmem:[%s5 + $0x38] sm:$0xff]
      %v419 = vld [vmem:[%s5 + $0x40] sm:$0xff]
      %v420 = vld [vmem:[%s5 + $0x48] sm:$0xff]
      %v421 = vld [vmem:[%s5 + $0x50] sm:$0xff]
      %v422 = vld [vmem:[%s5 + $0x58] sm:$0xff]
      %v423 = vld [vmem:[%s5 + $0x60] sm:$0xff]
      %v424 = vld [vmem:[%s5 + $0x68] sm:$0xff]
      %v425 = vld [vmem:[%s5 + $0x70] sm:$0xff]
      %v426 = vld [vmem:[%s5 + $0x78] sm:$0xff]
      %v427 = vld [vmem:[%s6] sm:$0x1]
      %v429 = vperm.slane %v427, 0
      %431 = vmatpush.msra.mxu0 %v426
      %432 = vmatpush.msra.mxu0 %v425
      %433 = vmatpush.msra.mxu0 %v424
      %434 = vmatpush.msra.mxu0 %v423
      %435 = vmatpush.msra.mxu0 %v422
      %436 = vmatpush.msra.mxu0 %v421
      %437 = vmatpush.msra.mxu0 %v420
      %438 = vmatpush.msra.mxu0 %v419
      %439 = vmatpush.msra.mxu0 %v418
      %440 = vmatpush.msra.mxu0 %v417
      %441 = vmatpush.msra.mxu0 %v416
      %442 = vmatpush.msra.mxu0 %v415
      %443 = vmatpush.msra.mxu0 %v414
      %444 = vmatpush.msra.mxu0 %v413
      %445 = vmatpush.msra.mxu0 %v412
      %446 = vmatpush.msra.mxu0 %v411
      %447 = vmatmul.f32.gmra.mxu0 %v410
      %v448 = vpop.f32.mrf.mxu0
      %v449 = vadd.f32 %v429, %v448
      %450 = vdwg.mxu0
      %v451 = vadd.f32 %v328, %v449
      %452 = vadd.xlane.f32.xlu0 %v451
      %v453 = vpop.xlane.xlu0 %452
      %v454 = vmul.f32 %v453, 0.03125
      %v455 = vmul.f32 %v451, %v451
      %456 = vadd.xlane.f32.xlu0 %v455
      %v457 = vpop.xlane.xlu0 %456
      %v458 = vmul.f32 %v457, 0.03125
      %v459 = vmul.f32 %v454, %v454
      %v460 = vsub.f32 %v458, %v459
      %v461 = vmax.f32 %v460, 0.0
      %v462 = vsub.f32 %v451, %v454
      %v463 = vadd.f32 %v461, 1e-05
      %v464 = vrsqrt.pop %v463
      %v465 = vmul.f32 %v464, %v463
      %v466 = vmul.f32 %v465, %v464
      %v467 = vmul.f32 0.5, %v466
      %v468 = vsub.f32 1.5, %v467
      %v469 = vmul.f32 %v464, %v468
      %vm470 = vweird.f32 %v463
      %vm471 = vweird.f32 %v464
      %vm472 = vmor %vm470, %vm471
      %v473 = vsel %vm472, %v464, %v469
      %v474 = vmul.f32 %v462, %v473
      %v475 = vld [vmem:[%s7] sm:$0x1]
      %v477 = vperm.slane %v475, 0
      %v479 = vmul.f32 %v474, %v477
      %v480 = vld [vmem:[%s8] sm:$0x1]
      %v482 = vperm.slane %v480, 0
      %v484 = vadd.f32 %v479, %v482
      %485 = vst [vmem:[%s327] sm:$0xff] %v484
      %p486 = scmp.lt.s32.totalorder %s20, 1
      %s487 = scalar_select %p486, %s20, 1
      %s488 = smul.addr %s487, 8
      %s489 = scalar_lea.vmem %s9, %s488
      // Predicated region
      $region57: #{structure_module_transition.1} parent=55 // pred_check
        %p490 = pneg %p232
      $region58: #{structure_module_transition.1} parent=55 // pred_check_branch
        %492 = sbr.rel (%p490) target = $region60
      $region59: #{structure_module_transition.1} parent=55 // pred_region
        _
      $region60: #{structure_module_transition.1} parent=55 // pred_fallthru
        _
    $region56: #{structure_module_transition.1} parent=5 // pred_fallthru
      _
    %p493 = scmp.le.s32.totalorder 2, %s15
    // Predicated region
    $region61: #{structure_module_transition.1} parent=5 // pred_check
      %p494 = pneg %p493
    $region62: #{structure_module_transition.1} parent=5 // pred_check_branch
      %496 = sbr.rel (%p494) target = $region64
    $region63: #{structure_module_transition.1} parent=5 // pred_region
      %s497 = ssub.s32 %s15, 2
      // Predicated region
      $region65: #{structure_module_transition.1} parent=63 // pred_check
        %p498 = pneg %p238
      $region66: #{structure_module_transition.1} parent=63 // pred_check_branch
        %500 = sbr.rel (%p498) target = $region68
      $region67: #{structure_module_transition.1} parent=63 // pred_region
        %p501 = scmp.lt.s32.totalorder %s21, 1
        %s502 = scalar_select %p501, %s21, 1
        %s503 = smul.addr %s502, 8
        %s504 = scalar_lea.vmem %s9, %s503
      $region68: #{structure_module_transition.1} parent=63 // pred_fallthru
        _
    $region64: #{structure_module_transition.1} parent=5 // pred_fallthru
      _
  $region6: #{structure_module_transition.1} parent=0 // loop_footer
    %s19 = sadd.s32 1, %s15
  $region7: #{structure_module_transition.1} parent=0 // loop_footer_branch
    %14 = sbr.rel target = $region3
  $region8: #{structure_module_transition.1} parent=0 // loop_exit
    _

</llo_original>
